<compile_context>
chip_gen: v5e
topology: v5e:2x2
jax: 0.10.0
libtpu: 0.0.40
codegen_flags: <defaults>
</compile_context>

<pallas_src>
import functools
import math

import jax
import jax.numpy as jnp
from jax import lax
from jax.experimental import pallas as pl
from jax.experimental.pallas import tpu as pltpu


_PARALLEL2 = pltpu.CompilerParams(
    dimension_semantics=("parallel", "parallel"))


# ----------------------------------------------------------------------------
# small in-kernel helpers
# ----------------------------------------------------------------------------

def _lrelu(y):
    return jnp.where(y >= 0.0, y, 0.2 * y)


def _apply_act(y, act):
    if act == "lrelu":
        return _lrelu(y)
    if act == "hardtanh":      # reference 'tanh' option == nn.Hardtanh (clamp)
        return jnp.clip(y, -1.0, 1.0)
    return y                   # 'linear'


def _pool_matrix(wo, w):
    """(wo, w) matrix P with P[i, 2i] = P[i, 2i+1] = 1 -> P @ rows sums
    adjacent column pairs (scaled by 0.25 at the call site)."""
    rows = lax.broadcasted_iota(jnp.int32, (wo, w), 0)
    cols = lax.broadcasted_iota(jnp.int32, (wo, w), 1)
    return jnp.where(cols // 2 == rows, 1.0, 0.0).astype(jnp.float32)


# ----------------------------------------------------------------------------
# Pallas kernels
# ----------------------------------------------------------------------------

def _conv3x3_row_kernel(x0_ref, x1_ref, x2_ref, w_ref, b_ref, o_ref,
                        *, scale, act, W):
    """One output row of a 3x3 'same' conv + wscale + activation.

    x{0,1,2}_ref : (1, 1, Wp, Cin) padded input rows h, h+1, h+2 (bf16)
    w_ref        : (3, 3, Cin, Cout) resident weight (bf16)
    b_ref        : (1, Cout) f32 bias
    o_ref        : (1, 1, W, Cout) bf16 output row
    """
    rows = (x0_ref[0, 0], x1_ref[0, 0], x2_ref[0, 0])   # each (Wp, Cin)
    acc = None
    for kh in range(3):
        row = rows[kh]
        for kw in range(3):
            part = jnp.dot(row[kw:kw + W, :], w_ref[kh, kw],
                           preferred_element_type=jnp.float32)
            acc = part if acc is None else acc + part
    y = acc * scale + b_ref[...]
    o_ref[0, 0] = _apply_act(y, act).astype(o_ref.dtype)


def _conv3x3_pool_kernel(x0_ref, x1_ref, x2_ref, x3_ref, w_ref, b_ref, o_ref,
                         *, scale, act, W):
    """Two output rows of a 3x3 conv + wscale + act, fused 2x2 AvgPool.

    x{0..3}_ref : (1, 1, Wp, Cin) padded input rows 2h .. 2h+3 (bf16)
    o_ref       : (1, 1, W//2, Cout) bf16 pooled output row
    """
    rows = (x0_ref[0, 0], x1_ref[0, 0], x2_ref[0, 0], x3_ref[0, 0])

    def conv_row(r3):
        acc = None
        for kh in range(3):
            row = r3[kh]
            for kw in range(3):
                part = jnp.dot(row[kw:kw + W, :], w_ref[kh, kw],
                               preferred_element_type=jnp.float32)
                acc = part if acc is None else acc + part
        return _apply_act(acc * scale + b_ref[...], act)

    y0 = conv_row(rows[0:3])                 # conv output row 2h
    y1 = conv_row(rows[1:4])                 # conv output row 2h+1
    P = _pool_matrix(W // 2, W)
    pooled = 0.25 * jnp.dot(P, y0 + y1, preferred_element_type=jnp.float32)
    o_ref[0, 0] = pooled.astype(o_ref.dtype)


def _conv1x1_row_kernel(x_ref, w_ref, b_ref, o_ref, *, scale, act):
    """fromRGB (1x1 conv) + wscale + activation on one image row."""
    row = x_ref[0, 0].astype(jnp.float32)                      # (W, Cin)
    y = jnp.dot(row, w_ref[...], preferred_element_type=jnp.float32)
    y = y * scale + b_ref[...]
    o_ref[0, 0] = _apply_act(y, act).astype(o_ref.dtype)


def _down_fromrgb_lerp_kernel(i0_ref, i1_ref, x_ref, w_ref, b_ref, t_ref,
                              ox_ref, oi_ref, *, scale, W):
    """Fused: AvgPool2d(2) on the image, 1x1 fromRGB conv + wscale + lrelu,
    then lerp_clip(x, y, t).  Emits the new activation and the pooled image."""
    r0 = i0_ref[0, 0].astype(jnp.float32)                      # (W, 3)
    r1 = i1_ref[0, 0].astype(jnp.float32)
    P = _pool_matrix(W // 2, W)
    pooled = 0.25 * jnp.dot(P, r0 + r1, preferred_element_type=jnp.float32)
    y = jnp.dot(pooled, w_ref[...], preferred_element_type=jnp.float32)
    y = _lrelu(y * scale + b_ref[...])
    t = jnp.clip(t_ref[0], 0.0, 1.0)
    xv = x_ref[0, 0].astype(jnp.float32)
    ox_ref[0, 0] = (xv + (y - xv) * t).astype(ox_ref.dtype)
    oi_ref[0, 0] = pooled.astype(oi_ref.dtype)


def _group_std_kernel(xg_ref, o_ref):
    """GroupMinibatchNorm statistic: mean over features of the per-element
    group stddev."""
    xg = xg_ref[...].astype(jnp.float32)                       # [G, NG, F]
    mu = jnp.mean(xg, axis=0, keepdims=True)
    d = xg - mu
    v = jnp.mean(d * d, axis=0)                                # [NG, F]
    s = jnp.sqrt(v + 1e-8)
    o_ref[...] = jnp.mean(s, axis=-1, keepdims=True)           # [NG, 1]


def _dense_head_kernel(x_ref, w1_ref, w2_ref, o_ref, *, s1, s2):
    """Fused final DenseBlocks: lrelu(s1 * x@w1) then s2 * (.)@w2."""
    h = jnp.dot(x_ref[...].astype(jnp.float32), w1_ref[...],
                preferred_element_type=jnp.float32) * s1
    h = _lrelu(h)
    out = jnp.dot(h, w2_ref[...], preferred_element_type=jnp.float32) * s2
    o_ref[...] = out.astype(o_ref.dtype)


# ----------------------------------------------------------------------------
# Wrappers (glue + pallas_call)
# ----------------------------------------------------------------------------

def conv3x3_lrelu(x, w, b, scale, act="lrelu"):
    """3x3 'same' conv -> wscale -> activation on NHWC bf16 input."""
    B, H, W, Cin = x.shape
    Cout = w.shape[-1]
    xp = jnp.pad(x, ((0, 0), (1, 1), (1, 1), (0, 0)))
    Wp = W + 2

    def row_spec(k):
        return pl.BlockSpec((1, 1, Wp, Cin),
                            lambda bb, h, k=k: (bb, h + k, 0, 0))

    kernel = functools.partial(_conv3x3_row_kernel,
                               scale=float(scale), act=act, W=W)
    return pl.pallas_call(
        kernel,
        grid=(B, H),
        in_specs=[row_spec(0), row_spec(1), row_spec(2),
                  pl.BlockSpec((3, 3, Cin, Cout), lambda bb, h: (0, 0, 0, 0)),
                  pl.BlockSpec((1, Cout), lambda bb, h: (0, 0))],
        out_specs=pl.BlockSpec((1, 1, W, Cout), lambda bb, h: (bb, h, 0, 0)),
        out_shape=jax.ShapeDtypeStruct((B, H, W, Cout), jnp.bfloat16),
        compiler_params=_PARALLEL2,
    )(xp, xp, xp, w.astype(jnp.bfloat16), b)


def conv3x3_lrelu_pool(x, w, b, scale, act="lrelu"):
    """3x3 conv -> wscale -> activation -> AvgPool2d(2,2), fused."""
    B, H, W, Cin = x.shape
    Cout = w.shape[-1]
    Ho, Wo = H // 2, W // 2
    xp = jnp.pad(x, ((0, 0), (1, 1), (1, 1), (0, 0)))
    Wp = W + 2

    def row_spec(k):
        return pl.BlockSpec((1, 1, Wp, Cin),
                            lambda bb, h, k=k: (bb, 2 * h + k, 0, 0))

    kernel = functools.partial(_conv3x3_pool_kernel,
                               scale=float(scale), act=act, W=W)
    return pl.pallas_call(
        kernel,
        grid=(B, Ho),
        in_specs=[row_spec(0), row_spec(1), row_spec(2), row_spec(3),
                  pl.BlockSpec((3, 3, Cin, Cout), lambda bb, h: (0, 0, 0, 0)),
                  pl.BlockSpec((1, Cout), lambda bb, h: (0, 0))],
        out_specs=pl.BlockSpec((1, 1, Wo, Cout), lambda bb, h: (bb, h, 0, 0)),
        out_shape=jax.ShapeDtypeStruct((B, Ho, Wo, Cout), jnp.bfloat16),
        compiler_params=_PARALLEL2,
    )(xp, xp, xp, xp, w.astype(jnp.bfloat16), b)


def conv1x1_lrelu(x, w2d, b, scale, act="lrelu"):
    """fromRGB: 1x1 conv -> wscale -> activation (full-resolution level 0)."""
    B, H, W, Cin = x.shape
    Cout = w2d.shape[-1]
    kernel = functools.partial(_conv1x1_row_kernel,
                               scale=float(scale), act=act)
    return pl.pallas_call(
        kernel,
        grid=(B, H),
        in_specs=[pl.BlockSpec((1, 1, W, Cin), lambda bb, h: (bb, h, 0, 0)),
                  pl.BlockSpec((Cin, Cout), lambda bb, h: (0, 0)),
                  pl.BlockSpec((1, Cout), lambda bb, h: (0, 0))],
        out_specs=pl.BlockSpec((1, 1, W, Cout), lambda bb, h: (bb, h, 0, 0)),
        out_shape=jax.ShapeDtypeStruct((B, H, W, Cout), jnp.bfloat16),
        compiler_params=_PARALLEL2,
    )(x, w2d.astype(jnp.float32), b)


def down_fromrgb_lerp(img, x, w2d, b, scale, t):
    """Fused DownScale(image) + fromRGB 1x1 conv + wscale + lrelu + lerp_clip.

    Returns (new_x, pooled_image)."""
    B, H, W, Cin = img.shape
    Ho, Wo = H // 2, W // 2
    Cout = w2d.shape[-1]
    t_arr = jnp.asarray(t, jnp.float32).reshape(1)
    kernel = functools.partial(_down_fromrgb_lerp_kernel,
                               scale=float(scale), W=W)
    new_x, img_down = pl.pallas_call(
        kernel,
        grid=(B, Ho),
        in_specs=[pl.BlockSpec((1, 1, W, Cin), lambda bb, h: (bb, 2 * h, 0, 0)),
                  pl.BlockSpec((1, 1, W, Cin), lambda bb, h: (bb, 2 * h + 1, 0, 0)),
                  pl.BlockSpec((1, 1, Wo, Cout), lambda bb, h: (bb, h, 0, 0)),
                  pl.BlockSpec((Cin, Cout), lambda bb, h: (0, 0)),
                  pl.BlockSpec((1, Cout), lambda bb, h: (0, 0)),
                  pl.BlockSpec(memory_space=pltpu.MemorySpace.SMEM)],
        out_specs=(pl.BlockSpec((1, 1, Wo, Cout), lambda bb, h: (bb, h, 0, 0)),
                   pl.BlockSpec((1, 1, Wo, Cin), lambda bb, h: (bb, h, 0, 0))),
        out_shape=(jax.ShapeDtypeStruct((B, Ho, Wo, Cout), jnp.bfloat16),
                   jax.ShapeDtypeStruct((B, Ho, Wo, Cin), jnp.bfloat16)),
        compiler_params=_PARALLEL2,
    )(img, img, x, w2d.astype(jnp.float32), b, t_arr)
    return new_x, img_down


def group_minibatch_norm(x, group_size):
    """GroupMinibatchNorm on NHWC input -> concat stddev feature channel."""
    B, H, W, C = x.shape
    G = min(group_size, B)
    NG = B // G
    F = H * W * C
    xg = x.reshape(G, NG, F)   # same batch split as torch.reshape([G,-1,C,H,W])
    stat = pl.pallas_call(
        _group_std_kernel,
        grid=(1,),
        in_specs=[pl.BlockSpec((G, NG, F), lambda i: (0, 0, 0))],
        out_specs=pl.BlockSpec((NG, 1), lambda i: (0, 0)),
        out_shape=jax.ShapeDtypeStruct((NG, 1), jnp.float32),
    )(xg)
    # torch.repeat_interleave(y, group_size, dim=0): sample b gets stat[b // G]
    feat = jnp.repeat(stat[:, 0], G)
    feat = jnp.broadcast_to(feat[:, None, None, None], (B, H, W, 1))
    # TODO(synk): the concat (4x4 feature map, +1 channel) is done in JAX glue
    #             rather than fused into the following conv kernel.
    return jnp.concatenate([x, feat.astype(x.dtype)], axis=-1)


def dense_head(xf, w1, s1, w2, s2):
    """Fused final DenseBlocks: lrelu(s1 * xf@w1) -> s2 * (.)@w2 -> (B, 1)."""
    B, K1 = xf.shape
    N1 = w1.shape[1]
    kernel = functools.partial(_dense_head_kernel, s1=float(s1), s2=float(s2))
    return pl.pallas_call(
        kernel,
        grid=(1,),
        in_specs=[pl.BlockSpec((B, K1), lambda i: (0, 0)),
                  pl.BlockSpec((K1, N1), lambda i: (0, 0)),
                  pl.BlockSpec((N1, 1), lambda i: (0, 0))],
        out_specs=pl.BlockSpec((B, 1), lambda i: (0, 0)),
        out_shape=jax.ShapeDtypeStruct((B, 1), jnp.float32),
    )(xf, w1.astype(jnp.float32), w2.astype(jnp.float32))


# ----------------------------------------------------------------------------
# Parameter construction (deterministic, mirrors the reference __init__ shapes)
# ----------------------------------------------------------------------------

def _nf(stage, fmap_base, fmap_decay, fmap_max):
    return min(int(fmap_base / 2.0 ** (stage * fmap_decay)), fmap_max)


def init_params(key, cfg):
    num_channels = cfg["num_channels"]
    log2_init = int(math.log2(cfg["resolution"]))
    log2_last = int(math.log2(cfg["last_res"]))
    nf = lambda s: _nf(s, cfg["fmap_base"], cfg["fmap_decay"], cfg["fmap_max"])
    gain = math.sqrt(2.0)

    def conv_param(k, ksize, cin, cout):
        kw, kb = jax.random.split(k)
        return {
            "w": 0.1 * jax.random.normal(kw, (ksize, ksize, cin, cout), jnp.float32),
            "b": 0.1 * jax.random.normal(kb, (cout,), jnp.float32),
            "scale": gain / math.sqrt(cin * ksize * ksize),
        }

    def dense_param(k, din, dout, g):
        return {
            "w": 0.1 * jax.random.normal(k, (din, dout), jnp.float32),
            "scale": g / math.sqrt(din),
        }

    keys = iter(jax.random.split(key, 64))
    params = {"lod": jnp.zeros((), jnp.float32)}
    in_ch = nf(log2_init - 1)
    for log2_res in range(log2_init, log2_last - 1, -1):
        layer_idx = (log2_init - log2_res) * 2
        params[f"fromRGB{layer_idx // 2}"] = conv_param(
            next(keys), 1, num_channels, nf(log2_res - 1))
        if log2_res != log2_last:
            params[f"layer{layer_idx}"] = conv_param(next(keys), 3, in_ch, nf(log2_res - 1))
            in_ch = nf(log2_res - 1)
            # fused_scale=False path (only functional config in the reference)
            params[f"layer{layer_idx + 1}"] = conv_param(next(keys), 3, in_ch, nf(log2_res - 2))
            in_ch = nf(log2_res - 2)
        else:
            params[f"layer{layer_idx}"] = conv_param(next(keys), 3, in_ch + 1, nf(log2_res - 1))
            in_ch = nf(log2_res - 1)
            params[f"layer{layer_idx + 1}"] = dense_param(next(keys), in_ch * 16, nf(log2_res - 1), gain)
            params[f"layer{layer_idx + 2}"] = dense_param(next(keys), nf(log2_res - 1), 1, 1.0)
    return params


# ----------------------------------------------------------------------------
# Full forward pass (default branch: pre_model=False, post_model=False)
# ----------------------------------------------------------------------------

def pggan_discriminator_forward(params, image_nchw, cfg):
    log2_init = int(math.log2(cfg["resolution"]))
    log2_last = int(math.log2(cfg["last_res"]))
    assert image_nchw.ndim == 4
    assert image_nchw.shape[1] == cfg["num_channels"]
    assert image_nchw.shape[2] == cfg["resolution"]

    lod_in = params["lod"]
    # NCHW -> NHWC (channels on the 128-lane dim); bf16 activations for the MXU
    img = jnp.transpose(image_nchw, (0, 2, 3, 1)).astype(jnp.bfloat16)

    p = params["fromRGB0"]
    cout = p["w"].shape[-1]
    x = conv1x1_lrelu(img, p["w"].reshape(-1, cout), p["b"].reshape(1, -1), p["scale"])

    for res_log2 in range(log2_init, log2_last, -1):
        block_idx = log2_init - res_log2
        p0 = params[f"layer{2 * block_idx}"]
        x = conv3x3_lrelu(x, p0["w"], p0["b"].reshape(1, -1), p0["scale"])
        p1 = params[f"layer{2 * block_idx + 1}"]
        x = conv3x3_lrelu_pool(x, p1["w"], p1["b"].reshape(1, -1), p1["scale"])
        prgb = params[f"fromRGB{block_idx + 1}"]
        cout = prgb["w"].shape[-1]
        t = lod_in - float(block_idx)
        x, img = down_fromrgb_lerp(img, x, prgb["w"].reshape(-1, cout),
                                   prgb["b"].reshape(1, -1), prgb["scale"], t)

    block_idx = log2_init - log2_last
    x = group_minibatch_norm(x, cfg["group_size"])
    p = params[f"layer{2 * block_idx}"]
    x = conv3x3_lrelu(x, p["w"], p["b"].reshape(1, -1), p["scale"])

    # DenseBlock: torch flattens NCHW -> [B, C*H*W]; reproduce that order.
    B = x.shape[0]
    xf = jnp.transpose(x, (0, 3, 1, 2)).reshape(B, -1)
    p1 = params[f"layer{2 * block_idx + 1}"]
    p2 = params[f"layer{2 * block_idx + 2}"]
    return dense_head(xf, p1["w"], p1["scale"], p2["w"], p2["scale"])


# ----------------------------------------------------------------------------

if __name__ == "__main__":
    cfg = dict(
        num_channels=3,
        resolution=16,      # small resolution for the demo (1024 in the original)
        last_res=4,
        fmap_base=256,
        fmap_decay=1.0,
        fmap_max=64,
        group_size=4,
        fused_scale=False,  # the only functional configuration of the reference
    )
    key = jax.random.PRNGKey(0)
    pkey, xkey = jax.random.split(key)
    params = init_params(pkey, cfg)
    image = jax.random.normal(
        xkey, (4, cfg["num_channels"], cfg["resolution"], cfg["resolution"]),
        jnp.float32)

    out = pggan_discriminator_forward(params, image, cfg)
    out = jax.block_until_ready(out)

    assert out.shape == (4, 1), out.shape
    assert bool(jnp.all(jnp.isfinite(out)))
    print("KERNEL_OK")
</pallas_src>

<mosaic_0001>
module attributes {stable_mosaic.version = 11 : i64} {
  func.func @_conv1x1_row_kernel(%arg0: i32, %arg1: i32, %arg2: memref<1x1x16x3xbf16, #tpu.memory_space<vmem>>, %arg3: memref<3x32xf32, #tpu.memory_space<vmem>>, %arg4: memref<1x32xf32, #tpu.memory_space<vmem>>, %arg5: memref<1x1x16x32xbf16, #tpu.memory_space<vmem>>) attributes {dimension_semantics = [#tpu.dimension_semantics<parallel>, #tpu.dimension_semantics<parallel>], iteration_bounds = array<i64: 4, 16>, scalar_prefetch = 0 : i64, scratch_operands = 0 : i64, tpu.core_type = #tpu.core_type<tc>, window_params = [{transform_indices = @transform_0, window_bounds = array<i64: 1, 1, 16, 3>}, {pipeline_mode = #tpu.pipeline_mode<synchronous>, transform_indices = @transform_1, window_bounds = array<i64: 3, 32>}, {pipeline_mode = #tpu.pipeline_mode<synchronous>, transform_indices = @transform_2, window_bounds = array<i64: 1, 32>}, {transform_indices = @transform_3, window_bounds = array<i64: 1, 1, 16, 32>}]} {
    %c0 = arith.constant 0 : index
    %c0_0 = arith.constant 0 : index
    %c0_1 = arith.constant 0 : index
    %c0_2 = arith.constant 0 : index
    %0 = vector.load %arg2[%c0, %c0_0, %c0_1, %c0_2] : memref<1x1x16x3xbf16, #tpu.memory_space<vmem>>, vector<1x1x16x3xbf16>
    %1 = vector.shape_cast %0 : vector<1x1x16x3xbf16> to vector<16x3xbf16>
    %2 = arith.extf %1 : vector<16x3xbf16> to vector<16x3xf32>
    %c0_3 = arith.constant 0 : index
    %c0_4 = arith.constant 0 : index
    %3 = vector.load %arg3[%c0_3, %c0_4] : memref<3x32xf32, #tpu.memory_space<vmem>>, vector<3x32xf32>
    %cst = arith.constant dense<0.000000e+00> : vector<16x32xf32>
    %4 = tpu.matmul %2, %3, %cst {dimension_numbers = #tpu.dot_dimension_numbers<[1], [0], [0], [1], [0, 0, 1, 1], [], []>} : vector<16x3xf32>, vector<3x32xf32>, vector<16x32xf32> -> vector<16x32xf32>
    %cst_5 = arith.constant 0.816496611 : f32
    %5 = vector.broadcast %cst_5 : f32 to vector<16x32xf32>
    %6 = arith.mulf %4, %5 : vector<16x32xf32>
    %c0_6 = arith.constant 0 : index
    %c0_7 = arith.constant 0 : index
    %7 = vector.load %arg4[%c0_6, %c0_7] : memref<1x32xf32, #tpu.memory_space<vmem>>, vector<1x32xf32>
    %8 = vector.broadcast %7 : vector<1x32xf32> to vector<16x32xf32>
    %9 = arith.addf %6, %8 : vector<16x32xf32>
    %cst_8 = arith.constant 0.000000e+00 : f32
    %10 = vector.broadcast %cst_8 : f32 to vector<16x32xf32>
    %11 = arith.cmpf oge, %9, %10 : vector<16x32xf32>
    %cst_9 = arith.constant 2.000000e-01 : f32
    %12 = vector.broadcast %cst_9 : f32 to vector<16x32xf32>
    %13 = arith.mulf %12, %9 : vector<16x32xf32>
    %14 = arith.select %11, %9, %13 : vector<16x32xi1>, vector<16x32xf32>
    %15 = arith.truncf %14 : vector<16x32xf32> to vector<16x32xbf16>
    %c0_10 = arith.constant 0 : index
    %c0_11 = arith.constant 0 : index
    %c0_12 = arith.constant 0 : index
    %c0_13 = arith.constant 0 : index
    %16 = vector.load %arg5[%c0_10, %c0_11, %c0_12, %c0_13] : memref<1x1x16x32xbf16, #tpu.memory_space<vmem>>, vector<1x1x16x32xbf16>
    %17 = vector.shape_cast %16 : vector<1x1x16x32xbf16> to vector<16x32xbf16>
    %18 = vector.shape_cast %15 : vector<16x32xbf16> to vector<1x1x16x32xbf16>
    tpu.vector_store %arg5[%c0_10, %c0_11, %c0_12, %c0_13], %18 {strides = array<i32>} : memref<1x1x16x32xbf16, #tpu.memory_space<vmem>>, vector<1x1x16x32xbf16>,
    return
  }
  func.func @transform_0(%arg0: i32, %arg1: i32) -> (i32, i32, i32, i32) {
    %c0_i32 = arith.constant 0 : i32
    %c0_i32_0 = arith.constant 0 : i32
    %c0_i32_1 = arith.constant 0 : i32
    return %arg0, %arg1, %c0_i32, %c0_i32_0 : i32, i32, i32, i32
  }
  func.func @transform_1(%arg0: i32, %arg1: i32) -> (i32, i32) {
    %c0_i32 = arith.constant 0 : i32
    %c0_i32_0 = arith.constant 0 : i32
    %c0_i32_1 = arith.constant 0 : i32
    return %c0_i32, %c0_i32_0 : i32, i32
  }
  func.func @transform_2(%arg0: i32, %arg1: i32) -> (i32, i32) {
    %c0_i32 = arith.constant 0 : i32
    %c0_i32_0 = arith.constant 0 : i32
    %c0_i32_1 = arith.constant 0 : i32
    return %c0_i32, %c0_i32_0 : i32, i32
  }
  func.func @transform_3(%arg0: i32, %arg1: i32) -> (i32, i32, i32, i32) {
    %c0_i32 = arith.constant 0 : i32
    %c0_i32_0 = arith.constant 0 : i32
    %c0_i32_1 = arith.constant 0 : i32
    return %arg0, %arg1, %c0_i32, %c0_i32_0 : i32, i32, i32, i32
  }
}

</mosaic_0001>

<llo_original>
// kernel: tpu_custom_call.1
$region0: #{tpu_custom_call.1}
  #allocation0 [shape = 'u32[]', space=smem, size = 0x4, offset = 0x4, fixed_abs, tag = 'smem constant byte address 0x4 - core index']
  #allocation1 [shape = 'u32[72,128]{1,0:T(1,128)}', space=vmem, size = 0x9000, scoped, tag = 'internal scratch']
  %s0 = inlined_call_operand.vmem [shape: bf16[4,16,16,3], index: 0, kind: input, shape index: {}]
  %s1 = inlined_call_operand.vmem [shape: f32[3,32], index: 1, kind: input, shape index: {}]
  %s2 = inlined_call_operand.vmem [shape: f32[1,32], index: 2, kind: input, shape index: {}]
  %s3 = inlined_call_operand.hbm [shape: bf16[4,16,16,32], index: 3, kind: output, shape index: {}]
  %s4 = sld [smem:[#allocation0]]
  $region45: #{tpu_custom_call.1} parent=0
    _
  %s6 = ssub.s32 1, %s4
  %s7 = scalar_select 0, %s6, %s4
  $region1: #{tpu_custom_call.1} parent=0
    #allocation2 [shape = 'u8[8192]{0}', space=vmem, size = 0x2000, scoped, tag = 'output window, operand 0']
    #allocation3 [shape = 's32[2]{0}', space=sflag, size = 0x8, scoped, tag = 'scoped memory for tpu_custom_call.1']
    %8 = vsyncpa [#allocation3], 0
    %s9 = scalar_lea.sflag [#allocation3], 1
    %10 = vsyncpa %s9, 0
    loop: start=0, step=1, limit=66
    $region2: #{tpu_custom_call.1} parent=1 // loop_pre_header
      _
    $region3: #{tpu_custom_call.1} parent=1 // loop_header
      %s12 = sphi 0, %s16
      %p13 = scmp.ge.s32.totalorder %s12, 66
      %s19 = sphi 0, %s31
      %s20 = sphi 0, %s27
      %s21 = sphi 0, %s19
      %s22 = sphi 0, %s20
      %s23 = sphi 0, %s21
      %s24 = sphi 0, %s22
      %s36 = sphi 0, %s38
      %s39 = sphi 0, %s36
      %s40 = sphi 0, %s39
      %s56 = sphi 0, %s40
      %s60 = sphi 0, %s60
      %s62 = sphi 0, %s60
      %s63 = sphi 0, %s62
      %s77 = sphi 0, %s63
      %s81 = sphi 0, %s81
      %s83 = sphi 0, %s81
      %s84 = sphi 0, %s83
      %s98 = sphi 0, %s84
      %s106 = sphi 0, %s108
      %s109 = sphi 0, %s106
      %s110 = sphi 0, %s109
      %s126 = sphi 0, %s110
    $region4: #{tpu_custom_call.1} parent=1 // loop_header_branch
      %15 = sbr.rel (%p13) target = $region8
    $region5: #{tpu_custom_call.1} parent=1 // loop_body
      %s17 = ssub.s32 %s12, 1
      %s18 = ssub.s32 %s12, 2
      %s25 = sadd.s32 1, %s20
      %p26 = scmp.ge.s32.totalorder %s25, 16
      %s27 = scalar_select %p26, 0, %s25
      %s28 = sadd.s32 1, %s19
      %s29 = scalar_select %p26, %s28, %s19
      %p30 = scmp.ge.s32.totalorder %s29, 4
      %s31 = scalar_select %p30, 0, %s29
      %s32 = ssub.s32 %s19, %s31
      %s33 = ssub.s32 %s20, %s27
      %s34 = sor.u32 %s32, %s33
      %p35 = scmp.eq.s32.totalorder %s34, 0
      %s37 = sadd.s32 %s36, 1
      %s38 = scalar_select %p35, %s36, %s37
      %p41 = pneg %p35
      %p42 = scmp.eq.s32.totalorder %s12, 63
      %p43 = por %p41, %p42
      %p44 = scmp.ne.s32.totalorder %s36, %s39
      %p45 = scmp.eq.s32.totalorder %s12, 0
      %p46 = por %p44, %p45
      %p47 = scmp.ne.s32.totalorder %s36, %s39
      %p48 = scmp.eq.s32.totalorder %s17, 63
      %p49 = por %p47, %p48
      %p50 = scmp.ne.s32.totalorder %s39, %s40
      %p51 = scmp.eq.s32.totalorder %s17, 0
      %p52 = por %p50, %p51
      %p53 = scmp.ne.s32.totalorder %s39, %s40
      %p54 = scmp.eq.s32.totalorder %s18, 63
      %p55 = por %p53, %p54
      %p57 = scmp.ne.s32.totalorder %s40, %s56
      %p58 = scmp.eq.s32.totalorder %s18, 0
      %p59 = por %p57, %p58
      %s61 = sadd.s32 %s60, 1
      %p64 = scmp.eq.s32.totalorder %s12, 63
      %p65 = scmp.ne.s32.totalorder %s60, %s62
      %p66 = scmp.eq.s32.totalorder %s12, 0
      %p67 = por %p65, %p66
      %p68 = scmp.ne.s32.totalorder %s60, %s62
      %p69 = scmp.eq.s32.totalorder %s17, 63
      %p70 = por %p68, %p69
      %p71 = scmp.ne.s32.totalorder %s62, %s63
      %p72 = scmp.eq.s32.totalorder %s17, 0
      %p73 = por %p71, %p72
      %p74 = scmp.ne.s32.totalorder %s62, %s63
      %p75 = scmp.eq.s32.totalorder %s18, 63
      %p76 = por %p74, %p75
      %p78 = scmp.ne.s32.totalorder %s63, %s77
      %p79 = scmp.eq.s32.totalorder %s18, 0
      %p80 = por %p78, %p79
      %s82 = sadd.s32 %s81, 1
      %p85 = scmp.eq.s32.totalorder %s12, 63
      %p86 = scmp.ne.s32.totalorder %s81, %s83
      %p87 = scmp.eq.s32.totalorder %s12, 0
      %p88 = por %p86, %p87
      %p89 = scmp.ne.s32.totalorder %s81, %s83
      %p90 = scmp.eq.s32.totalorder %s17, 63
      %p91 = por %p89, %p90
      %p92 = scmp.ne.s32.totalorder %s83, %s84
      %p93 = scmp.eq.s32.totalorder %s17, 0
      %p94 = por %p92, %p93
      %p95 = scmp.ne.s32.totalorder %s83, %s84
      %p96 = scmp.eq.s32.totalorder %s18, 63
      %p97 = por %p95, %p96
      %p99 = scmp.ne.s32.totalorder %s84, %s98
      %p100 = scmp.eq.s32.totalorder %s18, 0
      %p101 = por %p99, %p100
      %s102 = ssub.s32 %s19, %s31
      %s103 = ssub.s32 %s20, %s27
      %s104 = sor.u32 %s102, %s103
      %p105 = scmp.eq.s32.totalorder %s104, 0
      %s107 = sadd.s32 %s106, 1
      %s108 = scalar_select %p105, %s106, %s107
      %p111 = pneg %p105
      %p112 = scmp.eq.s32.totalorder %s12, 63
      %p113 = por %p111, %p112
      %p114 = scmp.ne.s32.totalorder %s106, %s109
      %p115 = scmp.eq.s32.totalorder %s12, 0
      %p116 = por %p114, %p115
      %p117 = scmp.ne.s32.totalorder %s106, %s109
      %p118 = scmp.eq.s32.totalorder %s17, 63
      %p119 = por %p117, %p118
      %p120 = scmp.ne.s32.totalorder %s109, %s110
      %p121 = scmp.eq.s32.totalorder %s17, 0
      %p122 = por %p120, %p121
      %p123 = scmp.ne.s32.totalorder %s109, %s110
      %p124 = scmp.eq.s32.totalorder %s18, 63
      %p125 = por %p123, %p124
      %p127 = scmp.ne.s32.totalorder %s110, %s126
      %p128 = scmp.eq.s32.totalorder %s18, 0
      %p129 = por %p127, %p128
      %p130 = scmp.le.s32.totalorder 1, %s12
      %p131 = scmp.lt.s32.totalorder %s12, 65
      %p132 = pnand %p130, %p131
      %p133 = pneg %p132
      // Predicated region
      $region9: #{tpu_custom_call.1} parent=5 // pred_check
        _
      $region10: #{tpu_custom_call.1} parent=5 // pred_check_branch
        %135 = sbr.rel (%p132) target = $region12
      $region11: #{tpu_custom_call.1} parent=5 // pred_region
        %s136 = ssub.s32 %s12, 1
        // Predicated region
        $region13: #{tpu_custom_call.1} parent=11 // pred_check
          %p137 = pneg %p73
        $region14: #{tpu_custom_call.1} parent=11 // pred_check_branch
          %139 = sbr.rel (%p137) target = $region16
        $region15: #{tpu_custom_call.1} parent=11 // pred_region
          _
        $region16: #{tpu_custom_call.1} parent=11 // pred_fallthru
          _
        // Predicated region
        $region17: #{tpu_custom_call.1} parent=11 // pred_check
          %p140 = pneg %p94
        $region18: #{tpu_custom_call.1} parent=11 // pred_check_branch
          %142 = sbr.rel (%p140) target = $region20
        $region19: #{tpu_custom_call.1} parent=11 // pred_region
          _
        $region20: #{tpu_custom_call.1} parent=11 // pred_fallthru
          _
      $region12: #{tpu_custom_call.1} parent=5 // pred_fallthru
        _
      %p143 = scmp.lt.s32.totalorder %s12, 64
      // Predicated region
      $region21: #{tpu_custom_call.1} parent=5 // pred_check
        %p144 = pneg %p143
      $region22: #{tpu_custom_call.1} parent=5 // pred_check_branch
        %146 = sbr.rel (%p144) target = $region24
      $region23: #{tpu_custom_call.1} parent=5 // pred_region
        // Predicated region
        $region25: #{tpu_custom_call.1} parent=23 // pred_check
          %p147 = pneg %p46
        $region26: #{tpu_custom_call.1} parent=23 // pred_check_branch
          %149 = sbr.rel (%p147) target = $region28
        $region27: #{tpu_custom_call.1} parent=23 // pred_region
          %p150 = scmp.lt.s32.totalorder %s19, 3
          %s151 = scalar_select %p150, %s19, 3
          %p152 = scmp.lt.s32.totalorder %s20, 15
          %s153 = scalar_select %p152, %s20, 15
          %s154 = smul.addr %s153, 2
          %s155 = smul.addr %s151, 32
          %s156 = sadd.s32 %s154, %s155
          %s157 = smul.addr %s156, 4
          %s158 = scalar_lea.vmem %s0, %s157
        $region28: #{tpu_custom_call.1} parent=23 // pred_fallthru
          _
      $region24: #{tpu_custom_call.1} parent=5 // pred_fallthru
        _
      %p159 = scmp.le.s32.totalorder 1, %s12
      %p160 = scmp.lt.s32.totalorder %s12, 65
      %p161 = pnand %p159, %p160
      %p162 = pneg %p161
      // Predicated region
      $region29: #{tpu_custom_call.1} parent=5 // pred_check
        _
      $region30: #{tpu_custom_call.1} parent=5 // pred_check_branch
        %164 = sbr.rel (%p161) target = $region32
      $region31: #{tpu_custom_call.1} parent=5 // pred_region
        %s165 = ssub.s32 %s12, 1
        %p166 = scmp.lt.s32.totalorder %s21, 3
        %s167 = scalar_select %p166, %s21, 3
        %p168 = scmp.lt.s32.totalorder %s22, 15
        %s169 = scalar_select %p168, %s22, 15
        %s170 = smul.addr %s169, 2
        %s171 = smul.addr %s167, 32
        %s172 = sadd.s32 %s170, %s171
        %s173 = smul.addr %s172, 4
        %s174 = scalar_lea.vmem %s0, %s173
        %p175 = pneg %p52
        %p176 = pneg %p49
        %p177 = pneg %p73
        %p178 = pneg %p70
        %p179 = pneg %p94
        %p180 = pneg %p91
        %p181 = pneg %p122
        %p182 = pneg %p119
        %s183 = sand.u32 %s109, 1
        %s184 = scalar_lea.sflag [#allocation3], %s183
        %s185 = sand.u32 %s109, 1
        %s186 = smul.addr %s185, 8
        %s187 = scalar_lea.vmem [#allocation2], %s186
        %p188 = scmp.lt.s32.totalorder %s21, 3
        %s189 = scalar_select %p188, %s21, 3
        %p190 = scmp.lt.s32.totalorder %s22, 15
        %s191 = scalar_select %p190, %s22, 15
        %s192 = smul.addr %s191, 2
        %s193 = smul.addr %s189, 32
        %s194 = sadd.s32 %s192, %s193
        %s195 = smul.addr %s194, 4
        %s196 = scalar_lea.vmem %s0, %s195
        %v197 = vld [vmem:[%s196] sm:$0xf]
        %v198 = vld [vmem:[%s196 + $0x4] sm:$0xf]
        %v199 = vunpack.c.l.bf16 %v197
        %v200 = vunpack.c.l.bf16 %v198
        %v201 = vld [vmem:[%s1] sm:$0x7]
        %vm202 = vcmask 23552
        %v204 = vsel %vm202, %v199, 0
        %v207 = vsel %vm202, %v200, 0
        %vm209 = vcmask 1042432
        %v211 = vsel %vm209, %v201, 0
        %213 = vmatpush.msra.mxu0 0.0
        %214 = vmatpush.msra.mxu0 0.0
        %215 = vmatpush.msra.mxu0 0.0
        %216 = vmatpush.msra.mxu0 0.0
        %217 = vmatpush.msra.mxu0 0.0
        %218 = vmatpush.msra.mxu0 0.0
        %219 = vmatpush.msra.mxu0 0.0
        %220 = vmatpush.msra.mxu0 0.0
        %221 = vmatpush.msra.mxu0 0.0
        %222 = vmatpush.msra.mxu0 0.0
        %223 = vmatpush.msra.mxu0 0.0
        %224 = vmatpush.msra.mxu0 0.0
        %225 = vmatpush.msra.mxu0 0.0
        %226 = vmatpush.msra.mxu0 0.0
        %227 = vmatpush.msra.mxu0 0.0
        %228 = vmatpush.msra.mxu0 %v211
        %229 = vmatmul.f32.gmra.mxu0 %v204
        %v230 = vpop.f32.mrf.mxu0
        %v231 = vadd.f32 0.0, %v230
        %232 = vmatmul.f32.gmra.mxu0 %v207
        %v233 = vpop.f32.mrf.mxu0
        %v234 = vadd.f32 0.0, %v233
        %235 = vdwg.mxu0
        %v236 = vmul.f32 %v231, 0.8164966
        %v237 = vmul.f32 %v234, 0.8164966
        %v238 = vld [vmem:[%s2] sm:$0x1]
        %v240 = vperm.slane %v238, 0
        %v242 = vadd.f32 %v236, %v240
        %v243 = vadd.f32 %v237, %v240
        %vm244 = vcmp.ge.f32.partialorder %v242, 0.0
        %vm245 = vcmp.ge.f32.partialorder %v243, 0.0
        %v246 = vmul.f32 %v242, 0.2
        %v247 = vmul.f32 %v243, 0.2
        %v248 = vsel %vm244, %v242, %v246
        %v249 = vsel %vm245, %v243, %v247
        %v250 = vpack.c.bf16 %v248, %v248
        %v251 = vpack.c.bf16 %v249, %v249
        %vm252 = vcmask 257024
        %253 = vst.msk [vmem:[%s187] sm:$0xf] %vm252, %v250
        %254 = vst.msk [vmem:[%s187 + $0x4] sm:$0xf] %vm252, %v251
        %s255 = sand.u32 %s109, 1
        %s256 = scalar_lea.sflag [#allocation3], %s255
        %s257 = sand.u32 %s109, 1
        %s258 = smul.addr %s257, 8
        %s259 = scalar_lea.vmem [#allocation2], %s258
        // Predicated region
        $region33: #{tpu_custom_call.1} parent=31 // pred_check
          %p260 = pneg %p119
        $region34: #{tpu_custom_call.1} parent=31 // pred_check_branch
          %262 = sbr.rel (%p260) target = $region36
        $region35: #{tpu_custom_call.1} parent=31 // pred_region
          %264 = vsyncadd %s256, 0
          %s265 = smul.addr %s22, 2
          %s266 = smul.addr %s21, 32
          %s267 = sadd.s32 %s265, %s266
          %s268 = smul.addr %s267, 4
          %s269 = scalar_lea.hbm %s3, %s268
          %s270 = sshll.u32 %s259, 4
          %s271 = int_to_ptr.vmem [resolvable:$true] %s270
          %s272 = sshll.u32 %s269, 4
          %s273 = int_to_ptr.hbm [resolvable:$true] %s272
          %278 = dma.vmem_to_hbm [thread:$0]  %s271, 128, %s273, %s256, 64, 64, 4
        $region36: #{tpu_custom_call.1} parent=31 // pred_fallthru
          _
      $region32: #{tpu_custom_call.1} parent=5 // pred_fallthru
        _
      %p279 = scmp.le.s32.totalorder 2, %s12
      // Predicated region
      $region37: #{tpu_custom_call.1} parent=5 // pred_check
        %p280 = pneg %p279
      $region38: #{tpu_custom_call.1} parent=5 // pred_check_branch
        %282 = sbr.rel (%p280) target = $region40
      $region39: #{tpu_custom_call.1} parent=5 // pred_region
        %s283 = ssub.s32 %s12, 2
        // Predicated region
        $region41: #{tpu_custom_call.1} parent=39 // pred_check
          %p284 = pneg %p125
        $region42: #{tpu_custom_call.1} parent=39 // pred_check_branch
          %286 = sbr.rel (%p284) target = $region44
        $region43: #{tpu_custom_call.1} parent=39 // pred_region
          %s287 = sand.u32 %s110, 1
          %s288 = scalar_lea.sflag [#allocation3], %s287
          %s289 = sand.u32 %s110, 1
          %s290 = smul.addr %s289, 8
          %s291 = scalar_lea.vmem [#allocation2], %s290
          %293 = dma.done %s288, 128
        $region44: #{tpu_custom_call.1} parent=39 // pred_fallthru
          _
      $region40: #{tpu_custom_call.1} parent=5 // pred_fallthru
        _
    $region6: #{tpu_custom_call.1} parent=1 // loop_footer
      %s16 = sadd.s32 1, %s12
    $region7: #{tpu_custom_call.1} parent=1 // loop_footer_branch
      %11 = sbr.rel target = $region3
    $region8: #{tpu_custom_call.1} parent=1 // loop_exit
      _
    %294 = vsyncpa [#allocation3], 1
    %s295 = scalar_lea.sflag [#allocation3], 1
    %296 = vsyncpa %s295, 1

</llo_original>
